<compile_context>
chip_gen: v7x
topology: tpu7x:2x2x1
jax: 0.10.0
libtpu: 0.0.40
codegen_flags: <defaults>
</compile_context>

<pallas_src>
import jax
import jax.numpy as jnp
from jax.experimental import pallas as pl
from jax.experimental.pallas import tpu as pltpu


def _round_up(v, m):
    return (v + m - 1) // m * m


# ---------------------------------------------------------------------------
# Fused kernel: one block of B images per grid step.
#   conv3x3(pad=1) as ONE K=9*Cin matmul + bias + ReLU
#   -> block-diagonal global-avg-pool (MXU)  ->  FC (+ folded BN)
# ---------------------------------------------------------------------------
def _fused_kernel(x_ref, w_ref, bc_ref, pool_ref, wfc_ref, bfc_ref,
                  logits_ref, feat_ref):
    # x_ref    : (B*HW, 9*Cin) bf16  - im2col patches, batch folded into M
    # w_ref    : (9*Cin, Cout) bf16  - conv weight slab (single contraction)
    # bc_ref   : (1, Cout)   f32     - conv bias
    # pool_ref : (B, B*HW)   f32     - block-diagonal 1/(H*W) mean-pool matrix
    # wfc_ref  : (Cout, nattr) f32   - FC weight, eval-mode BN folded in
    # bfc_ref  : (1, nattr)  f32     - FC bias,   eval-mode BN folded in
    # logits_ref: (B, nattr)   feat_ref: (B, Cout)
    conv = jnp.dot(x_ref[...], w_ref[...],
                   preferred_element_type=jnp.float32)      # (B*HW, Cout), f32 acc
    act = jnp.maximum(conv + bc_ref[...], 0.0)              # bias + ReLU, f32 (v5e-safe)

    pooled = jnp.dot(pool_ref[...], act,
                     preferred_element_type=jnp.float32)    # (B, Cout) avg-pool on MXU
    feat_ref[...] = pooled

    logits_ref[...] = (
        jnp.dot(pooled, wfc_ref[...], preferred_element_type=jnp.float32)
        + bfc_ref[...])


# ---------------------------------------------------------------------------
# FeatClassifier.forward equivalent
# ---------------------------------------------------------------------------
def feat_classifier_forward(x, params, label=None, block_b=8):
    del label  # TODO(synk): label is unused by the inference forward path.
    N, Cin, H, W = x.shape
    w_conv = params["w_conv"]
    Cout = w_conv.shape[0]
    nattr = params["w_fc"].shape[0]
    HW = H * W
    K9 = 9 * Cin

    B = min(block_b, N)                   # images per grid step
    n_pad = _round_up(N, B)
    n_steps = n_pad // B

    # ---- cheap host-side glue: O(input)/O(params) ------------------------------
    # im2col into the lane dim (last dim = 9*Cin), bf16 for the MXU.
    xp = jnp.pad(x, ((0, 0), (0, 0), (1, 1), (1, 1)))                # (N,Cin,H+2,W+2)
    patches = [xp[:, :, dh:dh + H, dw:dw + W]
               for dh in range(3) for dw in range(3)]                # 9 x (N,Cin,H,W)
    cols = jnp.stack(patches, axis=0)                                # (9,N,Cin,H,W)
    cols = cols.transpose(1, 3, 4, 0, 2)                             # (N,H,W,9,Cin)
    x_cols = cols.reshape(N * HW, K9).astype(jnp.bfloat16)           # (N*HW, 9*Cin)
    if n_pad != N:                                                   # pad batch to B
        x_cols = jnp.pad(x_cols, ((0, (n_pad - N) * HW), (0, 0)))

    # conv weight slab: w_slab[tap*Cin+ci, o] = w_conv[o, ci, dh, dw], tap=dh*3+dw
    w_slab = w_conv.transpose(2, 3, 1, 0).reshape(K9, Cout).astype(jnp.bfloat16)
    b_conv = params["b_conv"].reshape(1, Cout).astype(jnp.float32)

    # block-diagonal mean-pool matrix: pool[b, m] = 1/HW if m belongs to image b.
    row = jnp.arange(B)[:, None]
    col = jnp.arange(B * HW)[None, :]
    pool = jnp.where(col // HW == row, 1.0 / HW, 0.0).astype(jnp.float32)

    # fold eval-mode BN into the FC (exact): y = (x@W^T + b - mu) * g/sqrt(v+eps) + beta
    scale = params["bn_gamma"] * jax.lax.rsqrt(params["bn_var"] + 1e-5)
    w_eff = (params["w_fc"] * scale[:, None]).T.astype(jnp.float32)      # (Cout, nattr)
    b_eff = ((params["b_fc"] - params["bn_mean"]) * scale
             + params["bn_beta"]).reshape(1, nattr).astype(jnp.float32)

    flops = int(2 * n_pad * HW * K9 * Cout            # conv matmul
                + 2 * n_steps * B * (B * HW) * Cout   # pooling matmul
                + 2 * n_pad * Cout * nattr)           # FC
    bytes_accessed = int(x_cols.size * 2 + w_slab.size * 2
                         + (b_conv.size + pool.size + w_eff.size + b_eff.size) * 4
                         + n_pad * (nattr + Cout) * 4)

    logits, feat = pl.pallas_call(
        _fused_kernel,
        grid=(n_steps,),
        in_specs=[
            pl.BlockSpec((B * HW, K9), lambda i: (i, 0)),     # per-block image patches
            pl.BlockSpec((K9, Cout), lambda i: (0, 0)),       # resident conv weights
            pl.BlockSpec((1, Cout), lambda i: (0, 0)),
            pl.BlockSpec((B, B * HW), lambda i: (0, 0)),      # resident pool matrix
            pl.BlockSpec((Cout, nattr), lambda i: (0, 0)),
            pl.BlockSpec((1, nattr), lambda i: (0, 0)),
        ],
        out_specs=(
            pl.BlockSpec((B, nattr), lambda i: (i, 0)),
            pl.BlockSpec((B, Cout), lambda i: (i, 0)),
        ),
        out_shape=(
            jax.ShapeDtypeStruct((n_pad, nattr), jnp.float32),
            jax.ShapeDtypeStruct((n_pad, Cout), jnp.float32),
        ),
        compiler_params=pltpu.CompilerParams(
            dimension_semantics=("parallel",),   # batch-block axis; megacore on v7x
        ),
        cost_estimate=pl.CostEstimate(flops=flops, transcendentals=0,
                                      bytes_accessed=bytes_accessed),
    )(x_cols, w_slab, b_conv, pool, w_eff, b_eff)

    return logits[:N], feat[:N]


# ---------------------------------------------------------------------------
# Pure-JAX reference (f32) used to validate the kernel numerics.
# ---------------------------------------------------------------------------
def _reference_forward(x, params):
    fm = jax.lax.conv_general_dilated(
        x, params["w_conv"], window_strides=(1, 1), padding=((1, 1), (1, 1)),
        dimension_numbers=("NCHW", "OIHW", "NCHW"))
    fm = jnp.maximum(fm + params["b_conv"][None, :, None, None], 0.0)
    feat = jnp.mean(fm, axis=(2, 3))
    logits = feat @ params["w_fc"].T + params["b_fc"]
    scale = params["bn_gamma"] / jnp.sqrt(params["bn_var"] + 1e-5)
    logits = (logits - params["bn_mean"]) * scale + params["bn_beta"]
    return logits, feat


if __name__ == "__main__":
    key = jax.random.PRNGKey(0)
    k_x, k_wc, k_bc, k_wf, k_bf, k_g, k_b = jax.random.split(key, 7)

    N, Cin, H, W = 2, 4, 16, 16      # small NCHW input
    Cfeat, nattr = 32, 8

    x = jax.random.normal(k_x, (N, Cin, H, W), dtype=jnp.float32)

    params = {
        "w_conv": 0.1 * jax.random.normal(k_wc, (Cfeat, Cin, 3, 3), jnp.float32),
        "b_conv": 0.05 * jax.random.normal(k_bc, (Cfeat,), jnp.float32),
        "w_fc":   0.1 * jax.random.normal(k_wf, (nattr, Cfeat), jnp.float32),
        "b_fc":   0.05 * jax.random.normal(k_bf, (nattr,), jnp.float32),
        "bn_gamma": 1.0 + 0.1 * jax.random.normal(k_g, (nattr,), jnp.float32),
        "bn_beta":  0.1 * jax.random.normal(k_b, (nattr,), jnp.float32),
        "bn_mean":  jnp.zeros((nattr,), jnp.float32),
        "bn_var":   jnp.ones((nattr,), jnp.float32),
    }

    logits, feat = jax.jit(feat_classifier_forward)(x, params)
    jax.block_until_ready((logits, feat))

    assert logits.shape == (N, nattr) and feat.shape == (N, Cfeat)
    assert jnp.all(jnp.isfinite(logits)) and jnp.all(jnp.isfinite(feat))

    # numerics vs. pure-JAX f32 reference (tolerance covers the bf16 MXU inputs)
    ref_logits, ref_feat = _reference_forward(x, params)
    assert jnp.allclose(feat, ref_feat, atol=2e-2, rtol=2e-2), (
        float(jnp.max(jnp.abs(feat - ref_feat))))
    assert jnp.allclose(logits, ref_logits, atol=2e-2, rtol=2e-2), (
        float(jnp.max(jnp.abs(logits - ref_logits))))

    print("KERNEL_OK")
</pallas_src>

<mosaic_0001>
module attributes {stable_mosaic.version = 11 : i64} {
  func.func @_fused_kernel(%arg0: i32, %arg1: memref<512x36xbf16, #tpu.memory_space<vmem>>, %arg2: memref<36x32xbf16, #tpu.memory_space<vmem>>, %arg3: memref<1x32xf32, #tpu.memory_space<vmem>>, %arg4: memref<2x512xf32, #tpu.memory_space<vmem>>, %arg5: memref<32x8xf32, #tpu.memory_space<vmem>>, %arg6: memref<1x8xf32, #tpu.memory_space<vmem>>, %arg7: memref<2x8xf32, #tpu.memory_space<vmem>>, %arg8: memref<2x32xf32, #tpu.memory_space<vmem>>) attributes {dimension_semantics = [#tpu.dimension_semantics<parallel>], iteration_bounds = array<i64: 1>, scalar_prefetch = 0 : i64, scratch_operands = 0 : i64, tpu.core_type = #tpu.core_type<tc>, window_params = [{transform_indices = @transform_0, window_bounds = array<i64: 512, 36>}, {pipeline_mode = #tpu.pipeline_mode<synchronous>, transform_indices = @transform_1, window_bounds = array<i64: 36, 32>}, {pipeline_mode = #tpu.pipeline_mode<synchronous>, transform_indices = @transform_2, window_bounds = array<i64: 1, 32>}, {pipeline_mode = #tpu.pipeline_mode<synchronous>, transform_indices = @transform_3, window_bounds = array<i64: 2, 512>}, {pipeline_mode = #tpu.pipeline_mode<synchronous>, transform_indices = @transform_4, window_bounds = array<i64: 32, 8>}, {pipeline_mode = #tpu.pipeline_mode<synchronous>, transform_indices = @transform_5, window_bounds = array<i64: 1, 8>}, {transform_indices = @transform_6, window_bounds = array<i64: 2, 8>}, {transform_indices = @transform_7, window_bounds = array<i64: 2, 32>}]} {
    %c0 = arith.constant 0 : index
    %c0_0 = arith.constant 0 : index
    %0 = vector.load %arg1[%c0, %c0_0] : memref<512x36xbf16, #tpu.memory_space<vmem>>, vector<512x36xbf16>
    %c0_1 = arith.constant 0 : index
    %c0_2 = arith.constant 0 : index
    %1 = vector.load %arg2[%c0_1, %c0_2] : memref<36x32xbf16, #tpu.memory_space<vmem>>, vector<36x32xbf16>
    %cst = arith.constant dense<0.000000e+00> : vector<512x32xf32>
    %2 = tpu.matmul %0, %1, %cst {dimension_numbers = #tpu.dot_dimension_numbers<[1], [0], [0], [1], [0, 0, 1, 1], [], []>} : vector<512x36xbf16>, vector<36x32xbf16>, vector<512x32xf32> -> vector<512x32xf32>
    %c0_3 = arith.constant 0 : index
    %c0_4 = arith.constant 0 : index
    %3 = vector.load %arg3[%c0_3, %c0_4] : memref<1x32xf32, #tpu.memory_space<vmem>>, vector<1x32xf32>
    %4 = vector.broadcast %3 : vector<1x32xf32> to vector<512x32xf32>
    %5 = arith.addf %2, %4 : vector<512x32xf32>
    %cst_5 = arith.constant 0.000000e+00 : f32
    %6 = vector.broadcast %cst_5 : f32 to vector<512x32xf32>
    %7 = arith.maximumf %5, %6 : vector<512x32xf32>
    %c0_6 = arith.constant 0 : index
    %c0_7 = arith.constant 0 : index
    %8 = vector.load %arg4[%c0_6, %c0_7] : memref<2x512xf32, #tpu.memory_space<vmem>>, vector<2x512xf32>
    %cst_8 = arith.constant dense<0.000000e+00> : vector<2x32xf32>
    %9 = tpu.matmul %8, %7, %cst_8 {dimension_numbers = #tpu.dot_dimension_numbers<[1], [0], [0], [1], [0, 0, 1, 1], [], []>} : vector<2x512xf32>, vector<512x32xf32>, vector<2x32xf32> -> vector<2x32xf32>
    %c0_9 = arith.constant 0 : index
    %c0_10 = arith.constant 0 : index
    %10 = vector.load %arg8[%c0_9, %c0_10] : memref<2x32xf32, #tpu.memory_space<vmem>>, vector<2x32xf32>
    tpu.vector_store %arg8[%c0_9, %c0_10], %9 {strides = array<i32>} : memref<2x32xf32, #tpu.memory_space<vmem>>, vector<2x32xf32>,
    %c0_11 = arith.constant 0 : index
    %c0_12 = arith.constant 0 : index
    %11 = vector.load %arg5[%c0_11, %c0_12] : memref<32x8xf32, #tpu.memory_space<vmem>>, vector<32x8xf32>
    %cst_13 = arith.constant dense<0.000000e+00> : vector<2x8xf32>
    %12 = tpu.matmul %9, %11, %cst_13 {dimension_numbers = #tpu.dot_dimension_numbers<[1], [0], [0], [1], [0, 0, 1, 1], [], []>} : vector<2x32xf32>, vector<32x8xf32>, vector<2x8xf32> -> vector<2x8xf32>
    %c0_14 = arith.constant 0 : index
    %c0_15 = arith.constant 0 : index
    %13 = vector.load %arg6[%c0_14, %c0_15] : memref<1x8xf32, #tpu.memory_space<vmem>>, vector<1x8xf32>
    %14 = vector.broadcast %13 : vector<1x8xf32> to vector<2x8xf32>
    %15 = arith.addf %12, %14 : vector<2x8xf32>
    %c0_16 = arith.constant 0 : index
    %c0_17 = arith.constant 0 : index
    %16 = vector.load %arg7[%c0_16, %c0_17] : memref<2x8xf32, #tpu.memory_space<vmem>>, vector<2x8xf32>
    tpu.vector_store %arg7[%c0_16, %c0_17], %15 {strides = array<i32>} : memref<2x8xf32, #tpu.memory_space<vmem>>, vector<2x8xf32>,
    return
  }
  func.func @transform_0(%arg0: i32) -> (i32, i32) {
    %c0_i32 = arith.constant 0 : i32
    %c0_i32_0 = arith.constant 0 : i32
    return %arg0, %c0_i32 : i32, i32
  }
  func.func @transform_1(%arg0: i32) -> (i32, i32) {
    %c0_i32 = arith.constant 0 : i32
    %c0_i32_0 = arith.constant 0 : i32
    %c0_i32_1 = arith.constant 0 : i32
    return %c0_i32, %c0_i32_0 : i32, i32
  }
  func.func @transform_2(%arg0: i32) -> (i32, i32) {
    %c0_i32 = arith.constant 0 : i32
    %c0_i32_0 = arith.constant 0 : i32
    %c0_i32_1 = arith.constant 0 : i32
    return %c0_i32, %c0_i32_0 : i32, i32
  }
  func.func @transform_3(%arg0: i32) -> (i32, i32) {
    %c0_i32 = arith.constant 0 : i32
    %c0_i32_0 = arith.constant 0 : i32
    %c0_i32_1 = arith.constant 0 : i32
    return %c0_i32, %c0_i32_0 : i32, i32
  }
  func.func @transform_4(%arg0: i32) -> (i32, i32) {
    %c0_i32 = arith.constant 0 : i32
    %c0_i32_0 = arith.constant 0 : i32
    %c0_i32_1 = arith.constant 0 : i32
    return %c0_i32, %c0_i32_0 : i32, i32
  }
  func.func @transform_5(%arg0: i32) -> (i32, i32) {
    %c0_i32 = arith.constant 0 : i32
    %c0_i32_0 = arith.constant 0 : i32
    %c0_i32_1 = arith.constant 0 : i32
    return %c0_i32, %c0_i32_0 : i32, i32
  }
  func.func @transform_6(%arg0: i32) -> (i32, i32) {
    %c0_i32 = arith.constant 0 : i32
    %c0_i32_0 = arith.constant 0 : i32
    return %arg0, %c0_i32 : i32, i32
  }
  func.func @transform_7(%arg0: i32) -> (i32, i32) {
    %c0_i32 = arith.constant 0 : i32
    %c0_i32_0 = arith.constant 0 : i32
    return %arg0, %c0_i32 : i32, i32
  }
}

</mosaic_0001>

<llo_original>
// kernel: feat_classifier_forward.1
$region0: #{feat_classifier_forward.1}
  #allocation0 [shape = 'u32[]', space=smem, size = 0x4, offset = 0x4, fixed_abs, tag = 'smem constant byte address 0x4 - core index']
  #allocation1 [shape = 'u32[144,128]{1,0:T(1,128)}', space=vmem, size = 0x12000, scoped, tag = 'internal scratch']
  %s0 = inlined_call_operand.vmem [shape: bf16[512,36], index: 0, kind: input, shape index: {}]
  %s1 = inlined_call_operand.vmem [shape: bf16[36,32], index: 1, kind: input, shape index: {}]
  %s2 = inlined_call_operand.vmem [shape: f32[1,32], index: 2, kind: input, shape index: {}]
  %s3 = inlined_call_operand.vmem [shape: f32[2,512], index: 3, kind: input, shape index: {}]
  %s4 = inlined_call_operand.vmem [shape: f32[32,8], index: 4, kind: input, shape index: {}]
  %s5 = inlined_call_operand.vmem [shape: f32[1,8], index: 5, kind: input, shape index: {}]
  %s6 = inlined_call_operand.hbm [shape: f32[2,8], index: 6, kind: output, shape index: {0}]
  %s7 = inlined_call_operand.hbm [shape: f32[2,32], index: 7, kind: output, shape index: {1}]
  %8 = xla_tuple %s6, %s7
  %s9 = sld [smem:[#allocation0]]
  $region42: #{feat_classifier_forward.1} parent=0
    _
  %s11 = ssub.s32 1, %s9
  %s12 = scalar_select 0, %s11, %s9
  $region1: #{feat_classifier_forward.1} parent=0
    #allocation2 [shape = 'u8[1024]{0}', space=vmem, size = 0x400, scoped, tag = 'output window, operand 0, single buffered']
    #allocation3 [shape = 's32[1]{0}', space=sflag, size = 0x4, scoped, tag = 'scoped memory for feat_classifier_forward.1']
    #allocation4 [shape = 'u8[1024]{0}', space=vmem, size = 0x400, scoped, tag = 'output window, operand 1, single buffered']
    #allocation5 [shape = 's32[1]{0}', space=sflag, size = 0x4, scoped, tag = 'scoped memory for feat_classifier_forward.1']
    %13 = vsyncpa [#allocation3], 0
    %14 = vsyncpa [#allocation5], 0
    // Predicated region
    $region2: #{feat_classifier_forward.1} parent=1 // pred_check
      _
    $region3: #{feat_classifier_forward.1} parent=1 // pred_check_branch
      %16 = sbr.rel (0) target = $region5
    $region4: #{feat_classifier_forward.1} parent=1 // pred_region
      _
    $region5: #{feat_classifier_forward.1} parent=1 // pred_fallthru
      _
    // Predicated region
    $region6: #{feat_classifier_forward.1} parent=1 // pred_check
      _
    $region7: #{feat_classifier_forward.1} parent=1 // pred_check_branch
      %18 = sbr.rel (0) target = $region9
    $region8: #{feat_classifier_forward.1} parent=1 // pred_region
      _
    $region9: #{feat_classifier_forward.1} parent=1 // pred_fallthru
      _
    // Predicated region
    $region10: #{feat_classifier_forward.1} parent=1 // pred_check
      _
    $region11: #{feat_classifier_forward.1} parent=1 // pred_check_branch
      %20 = sbr.rel (0) target = $region13
    $region12: #{feat_classifier_forward.1} parent=1 // pred_region
      _
    $region13: #{feat_classifier_forward.1} parent=1 // pred_fallthru
      _
    // Predicated region
    $region14: #{feat_classifier_forward.1} parent=1 // pred_check
      _
    $region15: #{feat_classifier_forward.1} parent=1 // pred_check_branch
      %22 = sbr.rel (0) target = $region17
    $region16: #{feat_classifier_forward.1} parent=1 // pred_region
      _
    $region17: #{feat_classifier_forward.1} parent=1 // pred_fallthru
      _
    // Predicated region
    $region18: #{feat_classifier_forward.1} parent=1 // pred_check
      _
    $region19: #{feat_classifier_forward.1} parent=1 // pred_check_branch
      %24 = sbr.rel (0) target = $region21
    $region20: #{feat_classifier_forward.1} parent=1 // pred_region
      _
    $region21: #{feat_classifier_forward.1} parent=1 // pred_fallthru
      _
    // Predicated region
    $region22: #{feat_classifier_forward.1} parent=1 // pred_check
      _
    $region23: #{feat_classifier_forward.1} parent=1 // pred_check_branch
      %26 = sbr.rel (0) target = $region25
    $region24: #{feat_classifier_forward.1} parent=1 // pred_region
      _
    $region25: #{feat_classifier_forward.1} parent=1 // pred_fallthru
      _
    %v28 = vld [vmem:[%s0] sm:$0xf]
    %v29 = vld [vmem:[%s0 + $0x4] sm:$0xf]
    %v30 = vld [vmem:[%s0 + $0x8] sm:$0xf]
    %v31 = vld [vmem:[%s0 + $0xc] sm:$0xf]
    %v32 = vld [vmem:[%s0 + $0x10] sm:$0xf]
    %v33 = vld [vmem:[%s0 + $0x14] sm:$0xf]
    %v34 = vld [vmem:[%s0 + $0x18] sm:$0xf]
    %v35 = vld [vmem:[%s0 + $0x1c] sm:$0xf]
    %v36 = vld [vmem:[%s0 + $0x20] sm:$0xf]
    %v37 = vld [vmem:[%s0 + $0x24] sm:$0xf]
    %v38 = vld [vmem:[%s0 + $0x28] sm:$0xf]
    %v39 = vld [vmem:[%s0 + $0x2c] sm:$0xf]
    %v40 = vld [vmem:[%s0 + $0x30] sm:$0xf]
    %v41 = vld [vmem:[%s0 + $0x34] sm:$0xf]
    %v42 = vld [vmem:[%s0 + $0x38] sm:$0xf]
    %v43 = vld [vmem:[%s0 + $0x3c] sm:$0xf]
    %v44 = vld [vmem:[%s0 + $0x40] sm:$0xf]
    %v45 = vld [vmem:[%s0 + $0x44] sm:$0xf]
    %v46 = vld [vmem:[%s0 + $0x48] sm:$0xf]
    %v47 = vld [vmem:[%s0 + $0x4c] sm:$0xf]
    %v48 = vld [vmem:[%s0 + $0x50] sm:$0xf]
    %v49 = vld [vmem:[%s0 + $0x54] sm:$0xf]
    %v50 = vld [vmem:[%s0 + $0x58] sm:$0xf]
    %v51 = vld [vmem:[%s0 + $0x5c] sm:$0xf]
    %v52 = vld [vmem:[%s0 + $0x60] sm:$0xf]
    %v53 = vld [vmem:[%s0 + $0x64] sm:$0xf]
    %v54 = vld [vmem:[%s0 + $0x68] sm:$0xf]
    %v55 = vld [vmem:[%s0 + $0x6c] sm:$0xf]
    %v56 = vld [vmem:[%s0 + $0x70] sm:$0xf]
    %v57 = vld [vmem:[%s0 + $0x74] sm:$0xf]
    %v58 = vld [vmem:[%s0 + $0x78] sm:$0xf]
    %v59 = vld [vmem:[%s0 + $0x7c] sm:$0xf]
    %v60 = vld [vmem:[%s0 + $0x80] sm:$0xf]
    %v61 = vld [vmem:[%s0 + $0x84] sm:$0xf]
    %v62 = vld [vmem:[%s0 + $0x88] sm:$0xf]
    %v63 = vld [vmem:[%s0 + $0x8c] sm:$0xf]
    %v64 = vld [vmem:[%s0 + $0x90] sm:$0xf]
    %v65 = vld [vmem:[%s0 + $0x94] sm:$0xf]
    %v66 = vld [vmem:[%s0 + $0x98] sm:$0xf]
    %v67 = vld [vmem:[%s0 + $0x9c] sm:$0xf]
    %v68 = vld [vmem:[%s0 + $0xa0] sm:$0xf]
    %v69 = vld [vmem:[%s0 + $0xa4] sm:$0xf]
    %v70 = vld [vmem:[%s0 + $0xa8] sm:$0xf]
    %v71 = vld [vmem:[%s0 + $0xac] sm:$0xf]
    %v72 = vld [vmem:[%s0 + $0xb0] sm:$0xf]
    %v73 = vld [vmem:[%s0 + $0xb4] sm:$0xf]
    %v74 = vld [vmem:[%s0 + $0xb8] sm:$0xf]
    %v75 = vld [vmem:[%s0 + $0xbc] sm:$0xf]
    %v76 = vld [vmem:[%s0 + $0xc0] sm:$0xf]
    %v77 = vld [vmem:[%s0 + $0xc4] sm:$0xf]
    %v78 = vld [vmem:[%s0 + $0xc8] sm:$0xf]
    %v79 = vld [vmem:[%s0 + $0xcc] sm:$0xf]
    %v80 = vld [vmem:[%s0 + $0xd0] sm:$0xf]
    %v81 = vld [vmem:[%s0 + $0xd4] sm:$0xf]
    %v82 = vld [vmem:[%s0 + $0xd8] sm:$0xf]
    %v83 = vld [vmem:[%s0 + $0xdc] sm:$0xf]
    %v84 = vld [vmem:[%s0 + $0xe0] sm:$0xf]
    %v85 = vld [vmem:[%s0 + $0xe4] sm:$0xf]
    %v86 = vld [vmem:[%s0 + $0xe8] sm:$0xf]
    %v87 = vld [vmem:[%s0 + $0xec] sm:$0xf]
    %v88 = vld [vmem:[%s0 + $0xf0] sm:$0xf]
    %v89 = vld [vmem:[%s0 + $0xf4] sm:$0xf]
    %v90 = vld [vmem:[%s0 + $0xf8] sm:$0xf]
    %v91 = vld [vmem:[%s0 + $0xfc] sm:$0xf]
    %v92 = vld [vmem:[%s1] sm:$0xf]
    %v93 = vld [vmem:[%s1 + $0x4] sm:$0xf]
    %v94 = vld [vmem:[%s1 + $0x8] sm:$0xf]
    %v95 = vld [vmem:[%s1 + $0xc] sm:$0xf]
    %v96 = vld [vmem:[%s1 + $0x10] sm:$0x3]
    %v97 = vld [vmem:[%s2] sm:$0x1]
    %v99 = vlaneseq
    %v100 = vshrl.u32 %v99, 7
    %v101 = vsub.s32 0, %v100
    %v102 = vrot.slane %v97, %v101
    %v168 = vunpack.c.l.b16 %v28
    %v169 = vunpack.c.l.b16 %v29
    %v170 = vunpack.c.l.b16 %v30
    %v171 = vunpack.c.l.b16 %v31
    %v172 = vunpack.c.l.b16 %v32
    %v173 = vunpack.c.l.b16 %v33
    %v174 = vunpack.c.l.b16 %v34
    %v175 = vunpack.c.l.b16 %v35
    %v176 = vunpack.c.l.b16 %v36
    %v177 = vunpack.c.l.b16 %v37
    %v178 = vunpack.c.l.b16 %v38
    %v179 = vunpack.c.l.b16 %v39
    %v180 = vunpack.c.l.b16 %v40
    %v181 = vunpack.c.l.b16 %v41
    %v182 = vunpack.c.l.b16 %v42
    %v183 = vunpack.c.l.b16 %v43
    %v184 = vunpack.c.l.b16 %v44
    %v185 = vunpack.c.l.b16 %v45
    %v186 = vunpack.c.l.b16 %v46
    %v187 = vunpack.c.l.b16 %v47
    %v188 = vunpack.c.l.b16 %v48
    %v189 = vunpack.c.l.b16 %v49
    %v190 = vunpack.c.l.b16 %v50
    %v191 = vunpack.c.l.b16 %v51
    %v192 = vunpack.c.l.b16 %v52
    %v193 = vunpack.c.l.b16 %v53
    %v194 = vunpack.c.l.b16 %v54
    %v195 = vunpack.c.l.b16 %v55
    %v196 = vunpack.c.l.b16 %v56
    %v197 = vunpack.c.l.b16 %v57
    %v198 = vunpack.c.l.b16 %v58
    %v199 = vunpack.c.l.b16 %v59
    %v200 = vunpack.c.l.b16 %v60
    %v201 = vunpack.c.l.b16 %v61
    %v202 = vunpack.c.l.b16 %v62
    %v203 = vunpack.c.l.b16 %v63
    %v204 = vunpack.c.l.b16 %v64
    %v205 = vunpack.c.l.b16 %v65
    %v206 = vunpack.c.l.b16 %v66
    %v207 = vunpack.c.l.b16 %v67
    %v208 = vunpack.c.l.b16 %v68
    %v209 = vunpack.c.l.b16 %v69
    %v210 = vunpack.c.l.b16 %v70
    %v211 = vunpack.c.l.b16 %v71
    %v212 = vunpack.c.l.b16 %v72
    %v213 = vunpack.c.l.b16 %v73
    %v214 = vunpack.c.l.b16 %v74
    %v215 = vunpack.c.l.b16 %v75
    %v216 = vunpack.c.l.b16 %v76
    %v217 = vunpack.c.l.b16 %v77
    %v218 = vunpack.c.l.b16 %v78
    %v219 = vunpack.c.l.b16 %v79
    %v220 = vunpack.c.l.b16 %v80
    %v221 = vunpack.c.l.b16 %v81
    %v222 = vunpack.c.l.b16 %v82
    %v223 = vunpack.c.l.b16 %v83
    %v224 = vunpack.c.l.b16 %v84
    %v225 = vunpack.c.l.b16 %v85
    %v226 = vunpack.c.l.b16 %v86
    %v227 = vunpack.c.l.b16 %v87
    %v228 = vunpack.c.l.b16 %v88
    %v229 = vunpack.c.l.b16 %v89
    %v230 = vunpack.c.l.b16 %v90
    %v231 = vunpack.c.l.b16 %v91
    %v232 = vpack.c.b16 %v169, %v168
    %v233 = vpack.c.b16 %v171, %v170
    %v234 = vpack.c.b16 %v173, %v172
    %v235 = vpack.c.b16 %v175, %v174
    %v236 = vpack.c.b16 %v177, %v176
    %v237 = vpack.c.b16 %v179, %v178
    %v238 = vpack.c.b16 %v181, %v180
    %v239 = vpack.c.b16 %v183, %v182
    %v240 = vpack.c.b16 %v185, %v184
    %v241 = vpack.c.b16 %v187, %v186
    %v242 = vpack.c.b16 %v189, %v188
    %v243 = vpack.c.b16 %v191, %v190
    %v244 = vpack.c.b16 %v193, %v192
    %v245 = vpack.c.b16 %v195, %v194
    %v246 = vpack.c.b16 %v197, %v196
    %v247 = vpack.c.b16 %v199, %v198
    %v248 = vpack.c.b16 %v201, %v200
    %v249 = vpack.c.b16 %v203, %v202
    %v250 = vpack.c.b16 %v205, %v204
    %v251 = vpack.c.b16 %v207, %v206
    %v252 = vpack.c.b16 %v209, %v208
    %v253 = vpack.c.b16 %v211, %v210
    %v254 = vpack.c.b16 %v213, %v212
    %v255 = vpack.c.b16 %v215, %v214
    %v256 = vpack.c.b16 %v217, %v216
    %v257 = vpack.c.b16 %v219, %v218
    %v258 = vpack.c.b16 %v221, %v220
    %v259 = vpack.c.b16 %v223, %v222
    %v260 = vpack.c.b16 %v225, %v224
    %v261 = vpack.c.b16 %v227, %v226
    %v262 = vpack.c.b16 %v229, %v228
    %v263 = vpack.c.b16 %v231, %v230
    %v269 = vunpack.c.l.b16 %v92
    %v270 = vunpack.c.l.b16 %v93
    %v271 = vunpack.c.l.b16 %v94
    %v272 = vunpack.c.l.b16 %v95
    %v273 = vunpack.c.l.b16 %v96
    %v274 = vpack.c.b16 %v270, %v269
    %v275 = vpack.c.b16 %v272, %v271
    %v276 = vpack.c.b16 %v273, %v273
    %vm279 = vcmask 293888
    %v281 = vsel %vm279, %v232, 0
    %v284 = vsel %vm279, %v233, 0
    %v287 = vsel %vm279, %v234, 0
    %v290 = vsel %vm279, %v235, 0
    %v293 = vsel %vm279, %v236, 0
    %v296 = vsel %vm279, %v237, 0
    %v299 = vsel %vm279, %v238, 0
    %v302 = vsel %vm279, %v239, 0
    %v305 = vsel %vm279, %v240, 0
    %v308 = vsel %vm279, %v241, 0
    %v311 = vsel %vm279, %v242, 0
    %v314 = vsel %vm279, %v243, 0
    %v317 = vsel %vm279, %v244, 0
    %v320 = vsel %vm279, %v245, 0
    %v323 = vsel %vm279, %v246, 0
    %v326 = vsel %vm279, %v247, 0
    %v329 = vsel %vm279, %v248, 0
    %v332 = vsel %vm279, %v249, 0
    %v335 = vsel %vm279, %v250, 0
    %v338 = vsel %vm279, %v251, 0
    %v341 = vsel %vm279, %v252, 0
    %v344 = vsel %vm279, %v253, 0
    %v347 = vsel %vm279, %v254, 0
    %v350 = vsel %vm279, %v255, 0
    %v353 = vsel %vm279, %v256, 0
    %v356 = vsel %vm279, %v257, 0
    %v359 = vsel %vm279, %v258, 0
    %v362 = vsel %vm279, %v259, 0
    %v365 = vsel %vm279, %v260, 0
    %v368 = vsel %vm279, %v261, 0
    %v371 = vsel %vm279, %v262, 0
    %v374 = vsel %vm279, %v263, 0
    %vm376 = vcmask 1041408
    %v378 = vsel %vm376, %v276, 0
    %380 = vmatprep.subr.bf16.mxu0 0
    %381 = vmatpush1.bf16.msra.mxu0 %v274
    %382 = vmatprep.subr.bf16.mxu0 0
    %383 = vmatpush1.bf16.msra.mxu0 %v275
    %384 = vmatprep.subr.bf16.mxu0 0
    %385 = vmatpush1.bf16.msra.mxu0 %v378
    %386 = vmatprep.subr.bf16.mxu0 0
    %387 = vmatpush1.bf16.msra.mxu0 0
    %388 = vmatprep.subr.bf16.mxu0 0
    %389 = vmatpush1.bf16.msra.mxu0 0
    %390 = vmatprep.subr.bf16.mxu0 0
    %391 = vmatpush1.bf16.msra.mxu0 0
    %392 = vmatprep.subr.bf16.mxu0 0
    %393 = vmatpush1.bf16.msra.mxu0 0
    %394 = vmatprep.subr.bf16.mxu0 0
    %395 = vmatpush1.bf16.msra.mxu0 0
    %396 = vmatprep.subr.bf16.mxu0 0
    %397 = vmatpush1.bf16.msra.mxu0 0
    %398 = vmatprep.subr.bf16.mxu0 0
    %399 = vmatpush1.bf16.msra.mxu0 0
    %400 = vmatprep.subr.bf16.mxu0 0
    %401 = vmatpush1.bf16.msra.mxu0 0
    %402 = vmatprep.subr.bf16.mxu0 0
    %403 = vmatpush1.bf16.msra.mxu0 0
    %404 = vmatprep.subr.bf16.mxu0 0
    %405 = vmatpush1.bf16.msra.mxu0 0
    %406 = vmatprep.subr.bf16.mxu0 0
    %407 = vmatpush1.bf16.msra.mxu0 0
    %408 = vmatprep.subr.bf16.mxu0 0
    %409 = vmatpush1.bf16.msra.mxu0 0
    %410 = vmatprep.subr.bf16.mxu0 0
    %411 = vmatpush1.bf16.msra.mxu0 0
    %412 = vmatprep.mubr.bf16.mxu0 0
    %413 = vmatmul.mubr.bf16.gmra.mrb[0].mxu0 %v281
    %v414 = vpop.f32.mrb[0].mxu0
    %v415 = vadd.f32 %v102, %v414
    %v416 = vpop.f32.mrb[0].mxu0
    %v417 = vpop.f32.mrb[0].mxu0
    %v418 = vadd.f32 %v102, %v417
    %v419 = vpop.f32.mrb[0].mxu0
    %420 = vmatprep.mubr.bf16.mxu0 0
    %421 = vmatmul.mubr.bf16.gmra.mrb[0].mxu0 %v284
    %v422 = vpop.f32.mrb[0].mxu0
    %v423 = vadd.f32 %v102, %v422
    %v424 = vpop.f32.mrb[0].mxu0
    %v425 = vpop.f32.mrb[0].mxu0
    %v426 = vadd.f32 %v102, %v425
    %v427 = vpop.f32.mrb[0].mxu0
    %428 = vmatprep.mubr.bf16.mxu0 0
    %429 = vmatmul.mubr.bf16.gmra.mrb[0].mxu0 %v287
    %v430 = vpop.f32.mrb[0].mxu0
    %v431 = vadd.f32 %v102, %v430
    %v432 = vpop.f32.mrb[0].mxu0
    %v433 = vpop.f32.mrb[0].mxu0
    %v434 = vadd.f32 %v102, %v433
    %v435 = vpop.f32.mrb[0].mxu0
    %436 = vmatprep.mubr.bf16.mxu0 0
    %437 = vmatmul.mubr.bf16.gmra.mrb[0].mxu0 %v290
    %v438 = vpop.f32.mrb[0].mxu0
    %v439 = vadd.f32 %v102, %v438
    %v440 = vpop.f32.mrb[0].mxu0
    %v441 = vpop.f32.mrb[0].mxu0
    %v442 = vadd.f32 %v102, %v441
    %v443 = vpop.f32.mrb[0].mxu0
    %444 = vmatprep.mubr.bf16.mxu0 0
    %445 = vmatmul.mubr.bf16.gmra.mrb[0].mxu0 %v293
    %v446 = vpop.f32.mrb[0].mxu0
    %v447 = vadd.f32 %v102, %v446
    %v448 = vpop.f32.mrb[0].mxu0
    %v449 = vpop.f32.mrb[0].mxu0
    %v450 = vadd.f32 %v102, %v449
    %v451 = vpop.f32.mrb[0].mxu0
    %452 = vmatprep.mubr.bf16.mxu0 0
    %453 = vmatmul.mubr.bf16.gmra.mrb[0].mxu0 %v296
    %v454 = vpop.f32.mrb[0].mxu0
    %v455 = vadd.f32 %v102, %v454
    %v456 = vpop.f32.mrb[0].mxu0
    %v457 = vpop.f32.mrb[0].mxu0
    %v458 = vadd.f32 %v102, %v457
    %v459 = vpop.f32.mrb[0].mxu0
    %460 = vmatprep.mubr.bf16.mxu0 0
    %461 = vmatmul.mubr.bf16.gmra.mrb[0].mxu0 %v299
    %v462 = vpop.f32.mrb[0].mxu0
    %v463 = vadd.f32 %v102, %v462
    %v464 = vpop.f32.mrb[0].mxu0
    %v465 = vpop.f32.mrb[0].mxu0
    %v466 = vadd.f32 %v102, %v465
    %v467 = vpop.f32.mrb[0].mxu0
    %468 = vmatprep.mubr.bf16.mxu0 0
    %469 = vmatmul.mubr.bf16.gmra.mrb[0].mxu0 %v302
    %v470 = vpop.f32.mrb[0].mxu0
    %v471 = vadd.f32 %v102, %v470
    %v472 = vpop.f32.mrb[0].mxu0
    %v473 = vpop.f32.mrb[0].mxu0
    %v474 = vadd.f32 %v102, %v473
    %v475 = vpop.f32.mrb[0].mxu0
    %476 = vmatprep.mubr.bf16.mxu0 0
    %477 = vmatmul.mubr.bf16.gmra.mrb[0].mxu0 %v305
    %v478 = vpop.f32.mrb[0].mxu0
    %v479 = vadd.f32 %v102, %v478
    %v480 = vpop.f32.mrb[0].mxu0
    %v481 = vpop.f32.mrb[0].mxu0
    %v482 = vadd.f32 %v102, %v481
    %v483 = vpop.f32.mrb[0].mxu0
    %484 = vmatprep.mubr.bf16.mxu0 0
    %485 = vmatmul.mubr.bf16.gmra.mrb[0].mxu0 %v308
    %v486 = vpop.f32.mrb[0].mxu0
    %v487 = vadd.f32 %v102, %v486
    %v488 = vpop.f32.mrb[0].mxu0
    %v489 = vpop.f32.mrb[0].mxu0
    %v490 = vadd.f32 %v102, %v489
    %v491 = vpop.f32.mrb[0].mxu0
    %492 = vmatprep.mubr.bf16.mxu0 0
    %493 = vmatmul.mubr.bf16.gmra.mrb[0].mxu0 %v311
    %v494 = vpop.f32.mrb[0].mxu0
    %v495 = vadd.f32 %v102, %v494
    %v496 = vpop.f32.mrb[0].mxu0
    %v497 = vpop.f32.mrb[0].mxu0
    %v498 = vadd.f32 %v102, %v497
    %v499 = vpop.f32.mrb[0].mxu0
    %500 = vmatprep.mubr.bf16.mxu0 0
    %501 = vmatmul.mubr.bf16.gmra.mrb[0].mxu0 %v314
    %v502 = vpop.f32.mrb[0].mxu0
    %v503 = vadd.f32 %v102, %v502
    %v504 = vpop.f32.mrb[0].mxu0
    %v505 = vpop.f32.mrb[0].mxu0
    %v506 = vadd.f32 %v102, %v505
    %v507 = vpop.f32.mrb[0].mxu0
    %508 = vmatprep.mubr.bf16.mxu0 0
    %509 = vmatmul.mubr.bf16.gmra.mrb[0].mxu0 %v317
    %v510 = vpop.f32.mrb[0].mxu0
    %v511 = vadd.f32 %v102, %v510
    %v512 = vpop.f32.mrb[0].mxu0
    %v513 = vpop.f32.mrb[0].mxu0
    %v514 = vadd.f32 %v102, %v513
    %v515 = vpop.f32.mrb[0].mxu0
    %516 = vmatprep.mubr.bf16.mxu0 0
    %517 = vmatmul.mubr.bf16.gmra.mrb[0].mxu0 %v320
    %v518 = vpop.f32.mrb[0].mxu0
    %v519 = vadd.f32 %v102, %v518
    %v520 = vpop.f32.mrb[0].mxu0
    %v521 = vpop.f32.mrb[0].mxu0
    %v522 = vadd.f32 %v102, %v521
    %v523 = vpop.f32.mrb[0].mxu0
    %524 = vmatprep.mubr.bf16.mxu0 0
    %525 = vmatmul.mubr.bf16.gmra.mrb[0].mxu0 %v323
    %v526 = vpop.f32.mrb[0].mxu0
    %v527 = vadd.f32 %v102, %v526
    %v528 = vpop.f32.mrb[0].mxu0
    %v529 = vpop.f32.mrb[0].mxu0
    %v530 = vadd.f32 %v102, %v529
    %v531 = vpop.f32.mrb[0].mxu0
    %532 = vmatprep.mubr.bf16.mxu0 0
    %533 = vmatmul.mubr.bf16.gmra.mrb[0].mxu0 %v326
    %v534 = vpop.f32.mrb[0].mxu0
    %v535 = vadd.f32 %v102, %v534
    %v536 = vpop.f32.mrb[0].mxu0
    %v537 = vpop.f32.mrb[0].mxu0
    %v538 = vadd.f32 %v102, %v537
    %v539 = vpop.f32.mrb[0].mxu0
    %540 = vmatprep.mubr.bf16.mxu0 0
    %541 = vmatmul.mubr.bf16.gmra.mrb[0].mxu0 %v329
    %v542 = vpop.f32.mrb[0].mxu0
    %v543 = vadd.f32 %v102, %v542
    %v544 = vpop.f32.mrb[0].mxu0
    %v545 = vpop.f32.mrb[0].mxu0
    %v546 = vadd.f32 %v102, %v545
    %v547 = vpop.f32.mrb[0].mxu0
    %548 = vmatprep.mubr.bf16.mxu0 0
    %549 = vmatmul.mubr.bf16.gmra.mrb[0].mxu0 %v332
    %v550 = vpop.f32.mrb[0].mxu0
    %v551 = vadd.f32 %v102, %v550
    %v552 = vpop.f32.mrb[0].mxu0
    %v553 = vpop.f32.mrb[0].mxu0
    %v554 = vadd.f32 %v102, %v553
    %v555 = vpop.f32.mrb[0].mxu0
    %556 = vmatprep.mubr.bf16.mxu0 0
    %557 = vmatmul.mubr.bf16.gmra.mrb[0].mxu0 %v335
    %v558 = vpop.f32.mrb[0].mxu0
    %v559 = vadd.f32 %v102, %v558
    %v560 = vpop.f32.mrb[0].mxu0
    %v561 = vpop.f32.mrb[0].mxu0
    %v562 = vadd.f32 %v102, %v561
    %v563 = vpop.f32.mrb[0].mxu0
    %564 = vmatprep.mubr.bf16.mxu0 0
    %565 = vmatmul.mubr.bf16.gmra.mrb[0].mxu0 %v338
    %v566 = vpop.f32.mrb[0].mxu0
    %v567 = vadd.f32 %v102, %v566
    %v568 = vpop.f32.mrb[0].mxu0
    %v569 = vpop.f32.mrb[0].mxu0
    %v570 = vadd.f32 %v102, %v569
    %v571 = vpop.f32.mrb[0].mxu0
    %572 = vmatprep.mubr.bf16.mxu0 0
    %573 = vmatmul.mubr.bf16.gmra.mrb[0].mxu0 %v341
    %v574 = vpop.f32.mrb[0].mxu0
    %v575 = vadd.f32 %v102, %v574
    %v576 = vpop.f32.mrb[0].mxu0
    %v577 = vpop.f32.mrb[0].mxu0
    %v578 = vadd.f32 %v102, %v577
    %v579 = vpop.f32.mrb[0].mxu0
    %580 = vmatprep.mubr.bf16.mxu0 0
    %581 = vmatmul.mubr.bf16.gmra.mrb[0].mxu0 %v344
    %v582 = vpop.f32.mrb[0].mxu0
    %v583 = vadd.f32 %v102, %v582
    %v584 = vpop.f32.mrb[0].mxu0
    %v585 = vpop.f32.mrb[0].mxu0
    %v586 = vadd.f32 %v102, %v585
    %v587 = vpop.f32.mrb[0].mxu0
    %588 = vmatprep.mubr.bf16.mxu0 0
    %589 = vmatmul.mubr.bf16.gmra.mrb[0].mxu0 %v347
    %v590 = vpop.f32.mrb[0].mxu0
    %v591 = vadd.f32 %v102, %v590
    %v592 = vpop.f32.mrb[0].mxu0
    %v593 = vpop.f32.mrb[0].mxu0
    %v594 = vadd.f32 %v102, %v593
    %v595 = vpop.f32.mrb[0].mxu0
    %596 = vmatprep.mubr.bf16.mxu0 0
    %597 = vmatmul.mubr.bf16.gmra.mrb[0].mxu0 %v350
    %v598 = vpop.f32.mrb[0].mxu0
    %v599 = vadd.f32 %v102, %v598
    %v600 = vpop.f32.mrb[0].mxu0
    %v601 = vpop.f32.mrb[0].mxu0
    %v602 = vadd.f32 %v102, %v601
    %v603 = vpop.f32.mrb[0].mxu0
    %604 = vmatprep.mubr.bf16.mxu0 0
    %605 = vmatmul.mubr.bf16.gmra.mrb[0].mxu0 %v353
    %v606 = vpop.f32.mrb[0].mxu0
    %v607 = vadd.f32 %v102, %v606
    %v608 = vpop.f32.mrb[0].mxu0
    %v609 = vpop.f32.mrb[0].mxu0
    %v610 = vadd.f32 %v102, %v609
    %v611 = vpop.f32.mrb[0].mxu0
    %612 = vmatprep.mubr.bf16.mxu0 0
    %613 = vmatmul.mubr.bf16.gmra.mrb[0].mxu0 %v356
    %v614 = vpop.f32.mrb[0].mxu0
    %v615 = vadd.f32 %v102, %v614
    %v616 = vpop.f32.mrb[0].mxu0
    %v617 = vpop.f32.mrb[0].mxu0
    %v618 = vadd.f32 %v102, %v617
    %v619 = vpop.f32.mrb[0].mxu0
    %620 = vmatprep.mubr.bf16.mxu0 0
    %621 = vmatmul.mubr.bf16.gmra.mrb[0].mxu0 %v359
    %v622 = vpop.f32.mrb[0].mxu0
    %v623 = vadd.f32 %v102, %v622
    %v624 = vpop.f32.mrb[0].mxu0
    %v625 = vpop.f32.mrb[0].mxu0
    %v626 = vadd.f32 %v102, %v625
    %v627 = vpop.f32.mrb[0].mxu0
    %628 = vmatprep.mubr.bf16.mxu0 0
    %629 = vmatmul.mubr.bf16.gmra.mrb[0].mxu0 %v362
    %v630 = vpop.f32.mrb[0].mxu0
    %v631 = vadd.f32 %v102, %v630
    %v632 = vpop.f32.mrb[0].mxu0
    %v633 = vpop.f32.mrb[0].mxu0
    %v634 = vadd.f32 %v102, %v633
    %v635 = vpop.f32.mrb[0].mxu0
    %636 = vmatprep.mubr.bf16.mxu0 0
    %637 = vmatmul.mubr.bf16.gmra.mrb[0].mxu0 %v365
    %v638 = vpop.f32.mrb[0].mxu0
    %v639 = vadd.f32 %v102, %v638
    %v640 = vpop.f32.mrb[0].mxu0
    %v641 = vpop.f32.mrb[0].mxu0
    %v642 = vadd.f32 %v102, %v641
    %v643 = vpop.f32.mrb[0].mxu0
    %644 = vmatprep.mubr.bf16.mxu0 0
    %645 = vmatmul.mubr.bf16.gmra.mrb[0].mxu0 %v368
    %v646 = vpop.f32.mrb[0].mxu0
    %v647 = vadd.f32 %v102, %v646
    %v648 = vpop.f32.mrb[0].mxu0
    %v649 = vpop.f32.mrb[0].mxu0
    %v650 = vadd.f32 %v102, %v649
    %v651 = vpop.f32.mrb[0].mxu0
    %652 = vmatprep.mubr.bf16.mxu0 0
    %653 = vmatmul.mubr.bf16.gmra.mrb[0].mxu0 %v371
    %v654 = vpop.f32.mrb[0].mxu0
    %v655 = vadd.f32 %v102, %v654
    %v656 = vpop.f32.mrb[0].mxu0
    %v657 = vpop.f32.mrb[0].mxu0
    %v658 = vadd.f32 %v102, %v657
    %v659 = vpop.f32.mrb[0].mxu0
    %660 = vmatprep.mubr.bf16.mxu0 0
    %661 = vmatmul.mubr.bf16.gmra.mrb[0].mxu0 %v374
    %v662 = vpop.f32.mrb[0].mxu0
    %v663 = vadd.f32 %v102, %v662
    %v664 = vpop.f32.mrb[0].mxu0
    %v665 = vpop.f32.mrb[0].mxu0
    %v666 = vadd.f32 %v102, %v665
    %v667 = vpop.f32.mrb[0].mxu0
    %668 = vdwg.mxu0
    %v669 = vmax.f32 %v415, 0.0
    %v670 = vmax.f32 %v418, 0.0
    %v671 = vmax.f32 %v423, 0.0
    %v672 = vmax.f32 %v426, 0.0
    %v673 = vmax.f32 %v431, 0.0
    %v674 = vmax.f32 %v434, 0.0
    %v675 = vmax.f32 %v439, 0.0
    %v676 = vmax.f32 %v442, 0.0
    %v677 = vmax.f32 %v447, 0.0
    %v678 = vmax.f32 %v450, 0.0
    %v679 = vmax.f32 %v455, 0.0
    %v680 = vmax.f32 %v458, 0.0
    %v681 = vmax.f32 %v463, 0.0
    %v682 = vmax.f32 %v466, 0.0
    %v683 = vmax.f32 %v471, 0.0
    %v684 = vmax.f32 %v474, 0.0
    %v685 = vmax.f32 %v479, 0.0
    %v686 = vmax.f32 %v482, 0.0
    %v687 = vmax.f32 %v487, 0.0
    %v688 = vmax.f32 %v490, 0.0
    %v689 = vmax.f32 %v495, 0.0
    %v690 = vmax.f32 %v498, 0.0
    %v691 = vmax.f32 %v503, 0.0
    %v692 = vmax.f32 %v506, 0.0
    %v693 = vmax.f32 %v511, 0.0
    %v694 = vmax.f32 %v514, 0.0
    %v695 = vmax.f32 %v519, 0.0
    %v696 = vmax.f32 %v522, 0.0
    %v697 = vmax.f32 %v527, 0.0
    %v698 = vmax.f32 %v530, 0.0
    %v699 = vmax.f32 %v535, 0.0
    %v700 = vmax.f32 %v538, 0.0
    %v701 = vmax.f32 %v543, 0.0
    %v702 = vmax.f32 %v546, 0.0
    %v703 = vmax.f32 %v551, 0.0
    %v704 = vmax.f32 %v554, 0.0
    %v705 = vmax.f32 %v559, 0.0
    %v706 = vmax.f32 %v562, 0.0
    %v707 = vmax.f32 %v567, 0.0
    %v708 = vmax.f32 %v570, 0.0
    %v709 = vmax.f32 %v575, 0.0
    %v710 = vmax.f32 %v578, 0.0
    %v711 = vmax.f32 %v583, 0.0
    %v712 = vmax.f32 %v586, 0.0
    %v713 = vmax.f32 %v591, 0.0
    %v714 = vmax.f32 %v594, 0.0
    %v715 = vmax.f32 %v599, 0.0
    %v716 = vmax.f32 %v602, 0.0
    %v717 = vmax.f32 %v607, 0.0
    %v718 = vmax.f32 %v610, 0.0
    %v719 = vmax.f32 %v615, 0.0
    %v720 = vmax.f32 %v618, 0.0
    %v721 = vmax.f32 %v623, 0.0
    %v722 = vmax.f32 %v626, 0.0
    %v723 = vmax.f32 %v631, 0.0
    %v724 = vmax.f32 %v634, 0.0
    %v725 = vmax.f32 %v639, 0.0
    %v726 = vmax.f32 %v642, 0.0
    %v727 = vmax.f32 %v647, 0.0
    %v728 = vmax.f32 %v650, 0.0
    %v729 = vmax.f32 %v655, 0.0
    %v730 = vmax.f32 %v658, 0.0
    %v731 = vmax.f32 %v663, 0.0
    %v732 = vmax.f32 %v666, 0.0
    %v733 = vld [vmem:[%s3] sm:$0xff]
    %v735 = vcombine.high %v733, %v733
    %v737 = vunpack.c.l.s4 1983009808
    %v738 = vunpack.c.0.s8 %v737
    %v739 = vlaneseq
    %v740 = vshrl.u32 %v739, 7
    %v741 = vsub.s32 %v738, %v740
    %v742 = vrot.slane %v733, %v741
    %v744 = vunpack.c.l.s4 1983009808
    %v745 = vunpack.c.0.s8 %v744
    %v746 = vlaneseq
    %v747 = vshrl.u32 %v746, 7
    %v748 = vsub.s32 %v745, %v747
    %v749 = vrot.slane %v735, %v748
    %v750 = vcombine.high %v742, %v742
    %v751 = vcombine.high %v749, %v749
    %756 = vmatprep.subr.mxu0 0.0
    %757 = vmatpush1.msra.mxu0 %v669
    %758 = vmatprep.subr.mxu0 0.0
    %759 = vmatpush1.msra.mxu0 %v670
    %760 = vmatprep.subr.mxu0 0.0
    %761 = vmatpush1.msra.mxu0 %v671
    %762 = vmatprep.subr.mxu0 0.0
    %763 = vmatpush1.msra.mxu0 %v672
    %764 = vmatprep.subr.mxu0 0.0
    %765 = vmatpush1.msra.mxu0 %v673
    %766 = vmatprep.subr.mxu0 0.0
    %767 = vmatpush1.msra.mxu0 %v674
    %768 = vmatprep.subr.mxu0 0.0
    %769 = vmatpush1.msra.mxu0 %v675
    %770 = vmatprep.subr.mxu0 0.0
    %771 = vmatpush1.msra.mxu0 %v676
    %772 = vmatprep.subr.mxu0 0.0
    %773 = vmatpush1.msra.mxu0 %v677
    %774 = vmatprep.subr.mxu0 0.0
    %775 = vmatpush1.msra.mxu0 %v678
    %776 = vmatprep.subr.mxu0 0.0
    %777 = vmatpush1.msra.mxu0 %v679
    %778 = vmatprep.subr.mxu0 0.0
    %779 = vmatpush1.msra.mxu0 %v680
    %780 = vmatprep.subr.mxu0 0.0
    %781 = vmatpush1.msra.mxu0 %v681
    %782 = vmatprep.subr.mxu0 0.0
    %783 = vmatpush1.msra.mxu0 %v682
    %784 = vmatprep.subr.mxu0 0.0
    %785 = vmatpush1.msra.mxu0 %v683
    %786 = vmatprep.subr.mxu0 0.0
    %787 = vmatpush1.msra.mxu0 %v684
    %788 = vmatprep.subr.mxu0 0.0
    %789 = vmatpush1.msra.mxu0 %v685
    %790 = vmatprep.subr.mxu0 0.0
    %791 = vmatpush1.msra.mxu0 %v686
    %792 = vmatprep.subr.mxu0 0.0
    %793 = vmatpush1.msra.mxu0 %v687
    %794 = vmatprep.subr.mxu0 0.0
    %795 = vmatpush1.msra.mxu0 %v688
    %796 = vmatprep.subr.mxu0 0.0
    %797 = vmatpush1.msra.mxu0 %v689
    %798 = vmatprep.subr.mxu0 0.0
    %799 = vmatpush1.msra.mxu0 %v690
    %800 = vmatprep.subr.mxu0 0.0
    %801 = vmatpush1.msra.mxu0 %v691
    %802 = vmatprep.subr.mxu0 0.0
    %803 = vmatpush1.msra.mxu0 %v692
    %804 = vmatprep.subr.mxu0 0.0
    %805 = vmatpush1.msra.mxu0 %v693
    %806 = vmatprep.subr.mxu0 0.0
    %807 = vmatpush1.msra.mxu0 %v694
    %808 = vmatprep.subr.mxu0 0.0
    %809 = vmatpush1.msra.mxu0 %v695
    %810 = vmatprep.subr.mxu0 0.0
    %811 = vmatpush1.msra.mxu0 %v696
    %812 = vmatprep.subr.mxu0 0.0
    %813 = vmatpush1.msra.mxu0 %v697
    %814 = vmatprep.subr.mxu0 0.0
    %815 = vmatpush1.msra.mxu0 %v698
    %816 = vmatprep.subr.mxu0 0.0
    %817 = vmatpush1.msra.mxu0 %v699
    %818 = vmatprep.subr.mxu0 0.0
    %819 = vmatpush1.msra.mxu0 %v700
    %820 = vmatprep.mubr.f32.mxu0 %v750
    %821 = vmatmul.mubr.f32.gmra.mrb[0].mxu0 %v742
    %v822 = vpop.f32.mrb[0].mxu0
    %v823 = vadd.f32 0.0, %v822
    %v824 = vpop.f32.mrb[0].mxu0
    %825 = vdwg.mxu0
    %826 = vmatprep.subr.mxu0 0.0
    %827 = vmatpush1.msra.mxu0 %v701
    %828 = vmatprep.subr.mxu0 0.0
    %829 = vmatpush1.msra.mxu0 %v702
    %830 = vmatprep.subr.mxu0 0.0
    %831 = vmatpush1.msra.mxu0 %v703
    %832 = vmatprep.subr.mxu0 0.0
    %833 = vmatpush1.msra.mxu0 %v704
    %834 = vmatprep.subr.mxu0 0.0
    %835 = vmatpush1.msra.mxu0 %v705
    %836 = vmatprep.subr.mxu0 0.0
    %837 = vmatpush1.msra.mxu0 %v706
    %838 = vmatprep.subr.mxu0 0.0
    %839 = vmatpush1.msra.mxu0 %v707
    %840 = vmatprep.subr.mxu0 0.0
    %841 = vmatpush1.msra.mxu0 %v708
    %842 = vmatprep.subr.mxu0 0.0
    %843 = vmatpush1.msra.mxu0 %v709
    %844 = vmatprep.subr.mxu0 0.0
    %845 = vmatpush1.msra.mxu0 %v710
    %846 = vmatprep.subr.mxu0 0.0
    %847 = vmatpush1.msra.mxu0 %v711
    %848 = vmatprep.subr.mxu0 0.0
    %849 = vmatpush1.msra.mxu0 %v712
    %850 = vmatprep.subr.mxu0 0.0
    %851 = vmatpush1.msra.mxu0 %v713
    %852 = vmatprep.subr.mxu0 0.0
    %853 = vmatpush1.msra.mxu0 %v714
    %854 = vmatprep.subr.mxu0 0.0
    %855 = vmatpush1.msra.mxu0 %v715
    %856 = vmatprep.subr.mxu0 0.0
    %857 = vmatpush1.msra.mxu0 %v716
    %858 = vmatprep.subr.mxu0 0.0
    %859 = vmatpush1.msra.mxu0 %v717
    %860 = vmatprep.subr.mxu0 0.0
    %861 = vmatpush1.msra.mxu0 %v718
    %862 = vmatprep.subr.mxu0 0.0
    %863 = vmatpush1.msra.mxu0 %v719
    %864 = vmatprep.subr.mxu0 0.0
    %865 = vmatpush1.msra.mxu0 %v720
    %866 = vmatprep.subr.mxu0 0.0
    %867 = vmatpush1.msra.mxu0 %v721
    %868 = vmatprep.subr.mxu0 0.0
    %869 = vmatpush1.msra.mxu0 %v722
    %870 = vmatprep.subr.mxu0 0.0
    %871 = vmatpush1.msra.mxu0 %v723
    %872 = vmatprep.subr.mxu0 0.0
    %873 = vmatpush1.msra.mxu0 %v724
    %874 = vmatprep.subr.mxu0 0.0
    %875 = vmatpush1.msra.mxu0 %v725
    %876 = vmatprep.subr.mxu0 0.0
    %877 = vmatpush1.msra.mxu0 %v726
    %878 = vmatprep.subr.mxu0 0.0
    %879 = vmatpush1.msra.mxu0 %v727
    %880 = vmatprep.subr.mxu0 0.0
    %881 = vmatpush1.msra.mxu0 %v728
    %882 = vmatprep.subr.mxu0 0.0
    %883 = vmatpush1.msra.mxu0 %v729
    %884 = vmatprep.subr.mxu0 0.0
    %885 = vmatpush1.msra.mxu0 %v730
    %886 = vmatprep.subr.mxu0 0.0
    %887 = vmatpush1.msra.mxu0 %v731
    %888 = vmatprep.subr.mxu0 0.0
    %889 = vmatpush1.msra.mxu0 %v732
    %890 = vmatprep.mubr.f32.mxu0 %v751
    %891 = vmatmul.mubr.f32.gmra.mrb[0].mxu0 %v749
    %v892 = vpop.f32.mrb[0].mxu0
    %v893 = vadd.f32 %v823, %v892
    %v894 = vpop.f32.mrb[0].mxu0
    %895 = vdwg.mxu0
    %vm896 = vcmask 254976
    %897 = vst.msk [vmem:[#allocation4] sm:$0x3] %vm896, %v893
    %v898 = vld [vmem:[%s4] sm:$0xff]
    %v899 = vld [vmem:[%s4 + $0x8] sm:$0xff]
    %v900 = vld [vmem:[%s4 + $0x10] sm:$0xff]
    %v901 = vld [vmem:[%s4 + $0x18] sm:$0xff]
    %v902 = vld [vmem:[%s5] sm:$0x1]
    %v904 = vlaneseq
    %v905 = vshrl.u32 %v904, 7
    %v906 = vsub.s32 0, %v905
    %v907 = vrot.slane %v902, %v906
    %vm909 = vcmask 261120
    %v911 = vsel %vm909, %v893, 0
    %913 = vmatprep.subr.mxu0 0.0
    %914 = vmatpush1.msra.mxu0 %v898
    %915 = vmatprep.subr.mxu0 0.0
    %916 = vmatpush1.msra.mxu0 %v899
    %917 = vmatprep.subr.mxu0 0.0
    %918 = vmatpush1.msra.mxu0 %v900
    %919 = vmatprep.subr.mxu0 0.0
    %920 = vmatpush1.msra.mxu0 %v901
    %921 = vmatprep.subr.mxu0 0.0
    %922 = vmatpush1.msra.mxu0 0.0
    %923 = vmatprep.subr.mxu0 0.0
    %924 = vmatpush1.msra.mxu0 0.0
    %925 = vmatprep.subr.mxu0 0.0
    %926 = vmatpush1.msra.mxu0 0.0
    %927 = vmatprep.subr.mxu0 0.0
    %928 = vmatpush1.msra.mxu0 0.0
    %929 = vmatprep.subr.mxu0 0.0
    %930 = vmatpush1.msra.mxu0 0.0
    %931 = vmatprep.subr.mxu0 0.0
    %932 = vmatpush1.msra.mxu0 0.0
    %933 = vmatprep.subr.mxu0 0.0
    %934 = vmatpush1.msra.mxu0 0.0
    %935 = vmatprep.subr.mxu0 0.0
    %936 = vmatpush1.msra.mxu0 0.0
    %937 = vmatprep.subr.mxu0 0.0
    %938 = vmatpush1.msra.mxu0 0.0
    %939 = vmatprep.subr.mxu0 0.0
    %940 = vmatpush1.msra.mxu0 0.0
    %941 = vmatprep.subr.mxu0 0.0
    %942 = vmatpush1.msra.mxu0 0.0
    %943 = vmatprep.subr.mxu0 0.0
    %944 = vmatpush1.msra.mxu0 0.0
    %945 = vmatprep.subr.mxu0 0.0
    %946 = vmatpush1.msra.mxu0 0.0
    %947 = vmatprep.subr.mxu0 0.0
    %948 = vmatpush1.msra.mxu0 0.0
    %949 = vmatprep.subr.mxu0 0.0
    %950 = vmatpush1.msra.mxu0 0.0
    %951 = vmatprep.subr.mxu0 0.0
    %952 = vmatpush1.msra.mxu0 0.0
    %953 = vmatprep.subr.mxu0 0.0
    %954 = vmatpush1.msra.mxu0 0.0
    %955 = vmatprep.subr.mxu0 0.0
    %956 = vmatpush1.msra.mxu0 0.0
    %957 = vmatprep.subr.mxu0 0.0
    %958 = vmatpush1.msra.mxu0 0.0
    %959 = vmatprep.subr.mxu0 0.0
    %960 = vmatpush1.msra.mxu0 0.0
    %961 = vmatprep.subr.mxu0 0.0
    %962 = vmatpush1.msra.mxu0 0.0
    %963 = vmatprep.subr.mxu0 0.0
    %964 = vmatpush1.msra.mxu0 0.0
    %965 = vmatprep.subr.mxu0 0.0
    %966 = vmatpush1.msra.mxu0 0.0
    %967 = vmatprep.subr.mxu0 0.0
    %968 = vmatpush1.msra.mxu0 0.0
    %969 = vmatprep.subr.mxu0 0.0
    %970 = vmatpush1.msra.mxu0 0.0
    %971 = vmatprep.subr.mxu0 0.0
    %972 = vmatpush1.msra.mxu0 0.0
    %973 = vmatprep.subr.mxu0 0.0
    %974 = vmatpush1.msra.mxu0 0.0
    %975 = vmatprep.subr.mxu0 0.0
    %976 = vmatpush1.msra.mxu0 0.0
    %977 = vmatprep.mubr.f32.mxu0 0.0
    %978 = vmatmul.mubr.f32.gmra.mrb[0].mxu0 %v911
    %v979 = vpop.f32.mrb[0].mxu0
    %v980 = vadd.f32 %v907, %v979
    %v981 = vpop.f32.mrb[0].mxu0
    %982 = vdwg.mxu0
    %vm983 = vcmask 58368
    %984 = vst.msk [vmem:[#allocation2] sm:$0x3] %vm983, %v980
    // Predicated region
    $region26: #{feat_classifier_forward.1} parent=1 // pred_check
      _
    $region27: #{feat_classifier_forward.1} parent=1 // pred_check_branch
      %986 = sbr.rel (0) target = $region29
    $region28: #{feat_classifier_forward.1} parent=1 // pred_region
      %s988 = ssub.s32 32, 32
      %989 = vsyncadd [#allocation3], %s988
      %s991 = sshll.u32 [#allocation2], 4
      %s992 = int_to_ptr.vmem [resolvable:$true] %s991
      %994 = dma.vmem_to_hbm [thread:$0]  %s992, 32, %s6, [#allocation3]
    $region29: #{feat_classifier_forward.1} parent=1 // pred_fallthru
      _
    // Predicated region
    $region30: #{feat_classifier_forward.1} parent=1 // pred_check
      _
    $region31: #{feat_classifier_forward.1} parent=1 // pred_check_branch
      %996 = sbr.rel (0) target = $region33
    $region32: #{feat_classifier_forward.1} parent=1 // pred_region
      %s998 = ssub.s32 32, 32
      %999 = vsyncadd [#allocation5], %s998
      %s1001 = sshll.u32 [#allocation4], 4
      %s1002 = int_to_ptr.vmem [resolvable:$true] %s1001
      %1004 = dma.vmem_to_hbm [thread:$0]  %s1002, 32, %s7, [#allocation5]
    $region33: #{feat_classifier_forward.1} parent=1 // pred_fallthru
      _
    // Predicated region
    $region34: #{feat_classifier_forward.1} parent=1 // pred_check
      _
    $region35: #{feat_classifier_forward.1} parent=1 // pred_check_branch
      %1006 = sbr.rel (0) target = $region37
    $region36: #{feat_classifier_forward.1} parent=1 // pred_region
      %1007 = dma.done [#allocation3], 32
    $region37: #{feat_classifier_forward.1} parent=1 // pred_fallthru
      _
    // Predicated region
    $region38: #{feat_classifier_forward.1} parent=1 // pred_check
      _
    $region39: #{feat_classifier_forward.1} parent=1 // pred_check_branch
      %1009 = sbr.rel (0) target = $region41
    $region40: #{feat_classifier_forward.1} parent=1 // pred_region
      %1010 = dma.done [#allocation5], 32
    $region41: #{feat_classifier_forward.1} parent=1 // pred_fallthru
      _
    %1011 = vsyncpa [#allocation3], 1
    %1012 = vsyncpa [#allocation5], 1

</llo_original>
